<compile_context>
chip_gen: v7x
topology: tpu7x:2x2x1
jax: 0.10.0
libtpu: 0.0.40
codegen_flags: <defaults>
</compile_context>

<pallas_src>
import jax
import jax.numpy as jnp
from jax.experimental import pallas as pl
from jax.experimental.pallas import tpu as pltpu


def _vae_encoder_kernel(x_ref, wmu_ref, bmu_ref, wvar_ref, bvar_ref,
                        mu_ref, lv_ref):
    """z_mu = relu(x@Wmu + bmu); z_log_var = 0.01 + relu(x@Wvar + bvar).

    Shared LHS tile, MXU matmuls with f32 accumulation, VPU epilogue.
    Only the useful output columns are stored (no padded slab writeback);
    the kernel is HBM/overhead-bound at K=32, N_out=8, so the narrow
    (masked-vst) stores are far cheaper than 8x-padded HBM bytes.
    """
    x = x_ref[...]
    mu = jnp.dot(x, wmu_ref[...], preferred_element_type=jnp.float32)
    lv = jnp.dot(x, wvar_ref[...], preferred_element_type=jnp.float32)
    mu_ref[...] = jnp.maximum(mu + bmu_ref[...], 0.0).astype(mu_ref.dtype)
    lv_ref[...] = (jnp.maximum(lv + bvar_ref[...], 0.0) + 0.01).astype(lv_ref.dtype)


def _vmem_capacity_bytes():
    """Generation-aware VMEM capacity (64 MiB/TC on v7x, 128 MiB on v5e/v6e)."""
    try:
        cap = getattr(pltpu.get_tpu_info(), "vmem_capacity_bytes", None)
        if cap:
            return int(cap)
    except Exception:
        pass
    return 64 * 1024 * 1024  # conservative fallback: v7x per-TensorCore VMEM


def _round_up(x, m):
    return (x + m - 1) // m * m


def pack_vae_encoder_params(params, compute_dtype=jnp.bfloat16):
    """One-time packing, hoisted out of the per-call hot path.

    params = (w_mu, b_mu, w_var, b_var); w_* stored (in, out) == torch weight.T.
    Weights are cast to the MXU compute dtype; biases stay f32 rows (added to
    the f32 accumulator).
    """
    w_mu, b_mu, w_var, b_var = params
    return (jnp.asarray(w_mu, compute_dtype),
            jnp.asarray(b_mu, jnp.float32).reshape(1, -1),
            jnp.asarray(w_var, compute_dtype),
            jnp.asarray(b_var, jnp.float32).reshape(1, -1))


def vae_encoder_forward(inputs_list, packed_params, *,
                        out_dtype=jnp.float32,
                        row_tile=1024,
                        max_single_block_bytes=None):
    """inputs_list: list of arrays, each (..., input_dim). Returns (z_mu, z_log_var)."""
    w_mu, b_mu, w_var, b_var = packed_params
    input_dim, half = w_mu.shape
    compute_dtype = w_mu.dtype

    # Glue in plain JAX (matches torch.stack / torch.reshape); one cast to the
    # MXU compute dtype.
    x = jnp.reshape(jnp.stack(inputs_list), (-1, input_dim)).astype(compute_dtype)
    n = x.shape[0]

    out_shape = (jax.ShapeDtypeStruct((n, half), out_dtype),
                 jax.ShapeDtypeStruct((n, half), out_dtype))

    vmem_cap = _vmem_capacity_bytes()
    if max_single_block_bytes is None:
        max_single_block_bytes = vmem_cap // 4          # generous headroom

    in_bytes = jnp.dtype(compute_dtype).itemsize
    ob = jnp.dtype(out_dtype).itemsize
    param_footprint = (w_mu.size + w_var.size) * in_bytes + (b_mu.size + b_var.size) * 4
    footprint = n * input_dim * in_bytes + 2 * n * half * ob + param_footprint

    if footprint <= max_single_block_bytes:
        # Small/medium N: single full-array block — no grid, no pipeline
        # machinery (the problem is launch/overhead-bound at these sizes).
        vmem_limit = int(min(vmem_cap - (8 << 20),
                             max(32 << 20, 4 * footprint + (2 << 20))))
        return pl.pallas_call(
            _vae_encoder_kernel,
            out_shape=out_shape,
            compiler_params=pltpu.CompilerParams(vmem_limit_bytes=vmem_limit),
        )(x, w_mu, b_mu, w_var, b_var)

    # Huge N: row-tiled, double-buffered streaming.  Weights/biases stay
    # VMEM-resident via constant index maps.  Ragged last tile is handled by
    # Pallas masking (pl.cdiv grid), so any N works.  Tile is capped so the
    # grid has >= 2 steps (v7x has 2 TensorCores sharded via "parallel").
    tm = max(8, min(int(row_tile), _round_up((n + 1) // 2, 8)))
    grid = (pl.cdiv(n, tm),)
    vmem_limit = int(min(vmem_cap // 2, 64 << 20))
    return pl.pallas_call(
        _vae_encoder_kernel,
        out_shape=out_shape,
        grid=grid,
        in_specs=[
            pl.BlockSpec((tm, input_dim), lambda i: (i, 0)),
            pl.BlockSpec((input_dim, half), lambda i: (0, 0)),
            pl.BlockSpec((1, half), lambda i: (0, 0)),
            pl.BlockSpec((input_dim, half), lambda i: (0, 0)),
            pl.BlockSpec((1, half), lambda i: (0, 0)),
        ],
        out_specs=(
            pl.BlockSpec((tm, half), lambda i: (i, 0)),
            pl.BlockSpec((tm, half), lambda i: (i, 0)),
        ),
        compiler_params=pltpu.CompilerParams(
            dimension_semantics=("parallel",),
            vmem_limit_bytes=vmem_limit),
    )(x, w_mu, b_mu, w_var, b_var)


def init_vae_encoder_params(key, input_dim, output_dim):
    """Deterministic init mimicking torch.nn.Linear (uniform(-1/sqrt(in), 1/sqrt(in)))."""
    half = output_dim // 2
    k1, k2, k3, k4 = jax.random.split(key, 4)
    bound = 1.0 / jnp.sqrt(jnp.float32(input_dim))
    # Stored as (in, out) == PyTorch weight.T
    w_mu = jax.random.uniform(k1, (input_dim, half), jnp.float32, -bound, bound)
    b_mu = jax.random.uniform(k2, (half,), jnp.float32, -bound, bound)
    w_var = jax.random.uniform(k3, (input_dim, half), jnp.float32, -bound, bound)
    b_var = jax.random.uniform(k4, (half,), jnp.float32, -bound, bound)
    return (w_mu, b_mu, w_var, b_var)


def _reference_forward(inputs_list, params, compute_dtype=jnp.float32):
    w_mu, b_mu, w_var, b_var = params
    x = jnp.reshape(jnp.stack(inputs_list), (-1, w_mu.shape[0]))
    x = x.astype(compute_dtype).astype(jnp.float32)
    wm = w_mu.astype(compute_dtype).astype(jnp.float32)
    wv = w_var.astype(compute_dtype).astype(jnp.float32)
    z_mu = jnp.maximum(x @ wm + b_mu, 0.0)
    z_log_var = 0.01 + jnp.maximum(x @ wv + b_var, 0.0)
    return z_mu, z_log_var


if __name__ == "__main__":
    input_dim = 32     # VAEEncoder(input_dim=32, output_dim=16)
    output_dim = 16
    half = output_dim // 2
    n_stack = 2        # list of 2 tensors ...
    per_item = 4       # ... each (4, 32)  -> flattened N = 8

    key = jax.random.PRNGKey(0)
    kp, kx, kl = jax.random.split(key, 3)
    params = init_vae_encoder_params(kp, input_dim, output_dim)

    inputs_list = [
        jax.random.normal(k, (per_item, input_dim), jnp.float32)
        for k in jax.random.split(kx, n_stack)
    ]

    # 1) f32 operands, single-block path (tight tolerance; MXU accumulation
    #    order may differ marginally from the XLA reference).
    packed_f32 = pack_vae_encoder_params(params, compute_dtype=jnp.float32)
    z_mu, z_log_var = jax.block_until_ready(
        vae_encoder_forward(inputs_list, packed_f32))
    ref_mu, ref_var = _reference_forward(inputs_list, params)
    assert z_mu.shape == (n_stack * per_item, half)
    assert z_log_var.shape == (n_stack * per_item, half)
    assert jnp.allclose(z_mu, ref_mu, atol=1e-5, rtol=1e-4)
    assert jnp.allclose(z_log_var, ref_var, atol=1e-5, rtol=1e-4)

    # 2) Default bf16 operands (native MXU path; halves x DMA), f32 accumulate.
    packed_bf16 = pack_vae_encoder_params(params)   # bf16 by default
    z_mu16, z_lv16 = jax.block_until_ready(
        vae_encoder_forward(inputs_list, packed_bf16))
    r_mu16, r_lv16 = _reference_forward(inputs_list, params, jnp.bfloat16)
    assert jnp.allclose(z_mu16, r_mu16, atol=2e-2, rtol=2e-2)
    assert jnp.allclose(z_lv16, r_lv16, atol=2e-2, rtol=2e-2)

    # 3) Grid path with ragged N (4000 not divisible by the 512-row tile),
    #    forced by an artificially tiny single-block budget: exercises
    #    pipelining, the "parallel" axis, and masked last-tile stores.
    big_inputs = [jax.random.normal(kl, (4000, input_dim), jnp.float32)]
    zb_mu, zb_lv = jax.block_until_ready(
        vae_encoder_forward(big_inputs, packed_bf16,
                            row_tile=512, max_single_block_bytes=1 << 16))
    rb_mu, rb_lv = _reference_forward(big_inputs, params, jnp.bfloat16)
    assert zb_mu.shape == (4000, half)
    assert zb_lv.shape == (4000, half)
    assert jnp.allclose(zb_mu, rb_mu, atol=2e-2, rtol=2e-2)
    assert jnp.allclose(zb_lv, rb_lv, atol=2e-2, rtol=2e-2)

    print("KERNEL_OK")
</pallas_src>

<mosaic_0001>
module attributes {stable_mosaic.version = 11 : i64} {
  func.func @_vae_encoder_kernel(%arg0: memref<8x32xf32, #tpu.memory_space<vmem>>, %arg1: memref<32x8xf32, #tpu.memory_space<vmem>>, %arg2: memref<1x8xf32, #tpu.memory_space<vmem>>, %arg3: memref<32x8xf32, #tpu.memory_space<vmem>>, %arg4: memref<1x8xf32, #tpu.memory_space<vmem>>, %arg5: memref<8x8xf32, #tpu.memory_space<vmem>>, %arg6: memref<8x8xf32, #tpu.memory_space<vmem>>) attributes {dimension_semantics = [], scalar_prefetch = 0 : i64, scratch_operands = 0 : i64, tpu.core_type = #tpu.core_type<tc>} {
    %c0 = arith.constant 0 : index
    %c0_0 = arith.constant 0 : index
    %0 = vector.load %arg0[%c0, %c0_0] : memref<8x32xf32, #tpu.memory_space<vmem>>, vector<8x32xf32>
    %c0_1 = arith.constant 0 : index
    %c0_2 = arith.constant 0 : index
    %1 = vector.load %arg1[%c0_1, %c0_2] : memref<32x8xf32, #tpu.memory_space<vmem>>, vector<32x8xf32>
    %cst = arith.constant dense<0.000000e+00> : vector<8x8xf32>
    %2 = tpu.matmul %0, %1, %cst {dimension_numbers = #tpu.dot_dimension_numbers<[1], [0], [0], [1], [0, 0, 1, 1], [], []>} : vector<8x32xf32>, vector<32x8xf32>, vector<8x8xf32> -> vector<8x8xf32>
    %c0_3 = arith.constant 0 : index
    %c0_4 = arith.constant 0 : index
    %3 = vector.load %arg3[%c0_3, %c0_4] : memref<32x8xf32, #tpu.memory_space<vmem>>, vector<32x8xf32>
    %cst_5 = arith.constant dense<0.000000e+00> : vector<8x8xf32>
    %4 = tpu.matmul %0, %3, %cst_5 {dimension_numbers = #tpu.dot_dimension_numbers<[1], [0], [0], [1], [0, 0, 1, 1], [], []>} : vector<8x32xf32>, vector<32x8xf32>, vector<8x8xf32> -> vector<8x8xf32>
    %c0_6 = arith.constant 0 : index
    %c0_7 = arith.constant 0 : index
    %5 = vector.load %arg2[%c0_6, %c0_7] : memref<1x8xf32, #tpu.memory_space<vmem>>, vector<1x8xf32>
    %6 = vector.broadcast %5 : vector<1x8xf32> to vector<8x8xf32>
    %7 = arith.addf %2, %6 : vector<8x8xf32>
    %cst_8 = arith.constant 0.000000e+00 : f32
    %8 = vector.broadcast %cst_8 : f32 to vector<8x8xf32>
    %9 = arith.maximumf %7, %8 : vector<8x8xf32>
    %c0_9 = arith.constant 0 : index
    %c0_10 = arith.constant 0 : index
    %10 = vector.load %arg5[%c0_9, %c0_10] : memref<8x8xf32, #tpu.memory_space<vmem>>, vector<8x8xf32>
    tpu.vector_store %arg5[%c0_9, %c0_10], %9 {strides = array<i32>} : memref<8x8xf32, #tpu.memory_space<vmem>>, vector<8x8xf32>,
    %c0_11 = arith.constant 0 : index
    %c0_12 = arith.constant 0 : index
    %11 = vector.load %arg4[%c0_11, %c0_12] : memref<1x8xf32, #tpu.memory_space<vmem>>, vector<1x8xf32>
    %12 = vector.broadcast %11 : vector<1x8xf32> to vector<8x8xf32>
    %13 = arith.addf %4, %12 : vector<8x8xf32>
    %cst_13 = arith.constant 0.000000e+00 : f32
    %14 = vector.broadcast %cst_13 : f32 to vector<8x8xf32>
    %15 = arith.maximumf %13, %14 : vector<8x8xf32>
    %cst_14 = arith.constant 0.00999999977 : f32
    %16 = vector.broadcast %cst_14 : f32 to vector<8x8xf32>
    %17 = arith.addf %15, %16 : vector<8x8xf32>
    %c0_15 = arith.constant 0 : index
    %c0_16 = arith.constant 0 : index
    %18 = vector.load %arg6[%c0_15, %c0_16] : memref<8x8xf32, #tpu.memory_space<vmem>>, vector<8x8xf32>
    tpu.vector_store %arg6[%c0_15, %c0_16], %17 {strides = array<i32>} : memref<8x8xf32, #tpu.memory_space<vmem>>, vector<8x8xf32>,
    return
  }
}

</mosaic_0001>

<llo_original>
// kernel: tpu_custom_call.1
$region0: #{tpu_custom_call.1}
  #allocation0 [shape = 'u32[]', space=smem, size = 0x4, offset = 0x4, fixed_abs, tag = 'smem constant byte address 0x4 - core index']
  #allocation1 [shape = 'u32[144,128]{1,0:T(1,128)}', space=vmem, size = 0x12000, scoped, tag = 'internal scratch']
  %s0 = inlined_call_operand.vmem [shape: f32[8,32], index: 0, kind: input, shape index: {}]
  %s1 = inlined_call_operand.vmem [shape: f32[32,8], index: 1, kind: input, shape index: {}]
  %s2 = inlined_call_operand.vmem [shape: f32[1,8], index: 2, kind: input, shape index: {}]
  %s3 = inlined_call_operand.vmem [shape: f32[32,8], index: 3, kind: input, shape index: {}]
  %s4 = inlined_call_operand.vmem [shape: f32[1,8], index: 4, kind: input, shape index: {}]
  %s5 = inlined_call_operand.hbm [shape: f32[8,8], index: 5, kind: output, shape index: {0}]
  %s6 = inlined_call_operand.hbm [shape: f32[8,8], index: 6, kind: output, shape index: {1}]
  %7 = xla_tuple %s5, %s6
  %s8 = sld [smem:[#allocation0]]
  $region38: #{tpu_custom_call.1} parent=0
    _
  %s10 = ssub.s32 1, %s8
  %s11 = scalar_select 0, %s10, %s8
  $region1: #{tpu_custom_call.1} parent=0
    #allocation2 [shape = 'u8[4096]{0}', space=vmem, size = 0x1000, scoped, tag = 'output window, operand 0, single buffered']
    #allocation3 [shape = 's32[1]{0}', space=sflag, size = 0x4, scoped, tag = 'scoped memory for tpu_custom_call.1']
    #allocation4 [shape = 'u8[4096]{0}', space=vmem, size = 0x1000, scoped, tag = 'output window, operand 1, single buffered']
    #allocation5 [shape = 's32[1]{0}', space=sflag, size = 0x4, scoped, tag = 'scoped memory for tpu_custom_call.1']
    %12 = vsyncpa [#allocation3], 0
    %13 = vsyncpa [#allocation5], 0
    // Predicated region
    $region2: #{tpu_custom_call.1} parent=1 // pred_check
      _
    $region3: #{tpu_custom_call.1} parent=1 // pred_check_branch
      %15 = sbr.rel (0) target = $region5
    $region4: #{tpu_custom_call.1} parent=1 // pred_region
      _
    $region5: #{tpu_custom_call.1} parent=1 // pred_fallthru
      _
    // Predicated region
    $region6: #{tpu_custom_call.1} parent=1 // pred_check
      _
    $region7: #{tpu_custom_call.1} parent=1 // pred_check_branch
      %17 = sbr.rel (0) target = $region9
    $region8: #{tpu_custom_call.1} parent=1 // pred_region
      _
    $region9: #{tpu_custom_call.1} parent=1 // pred_fallthru
      _
    // Predicated region
    $region10: #{tpu_custom_call.1} parent=1 // pred_check
      _
    $region11: #{tpu_custom_call.1} parent=1 // pred_check_branch
      %19 = sbr.rel (0) target = $region13
    $region12: #{tpu_custom_call.1} parent=1 // pred_region
      _
    $region13: #{tpu_custom_call.1} parent=1 // pred_fallthru
      _
    // Predicated region
    $region14: #{tpu_custom_call.1} parent=1 // pred_check
      _
    $region15: #{tpu_custom_call.1} parent=1 // pred_check_branch
      %21 = sbr.rel (0) target = $region17
    $region16: #{tpu_custom_call.1} parent=1 // pred_region
      _
    $region17: #{tpu_custom_call.1} parent=1 // pred_fallthru
      _
    // Predicated region
    $region18: #{tpu_custom_call.1} parent=1 // pred_check
      _
    $region19: #{tpu_custom_call.1} parent=1 // pred_check_branch
      %23 = sbr.rel (0) target = $region21
    $region20: #{tpu_custom_call.1} parent=1 // pred_region
      _
    $region21: #{tpu_custom_call.1} parent=1 // pred_fallthru
      _
    %v24 = vld [vmem:[%s0] sm:$0xff]
    %v25 = vld [vmem:[%s1] sm:$0xff]
    %v26 = vld [vmem:[%s1 + $0x8] sm:$0xff]
    %v27 = vld [vmem:[%s1 + $0x10] sm:$0xff]
    %v28 = vld [vmem:[%s1 + $0x18] sm:$0xff]
    %v29 = vld [vmem:[%s3] sm:$0xff]
    %v30 = vld [vmem:[%s3 + $0x8] sm:$0xff]
    %v31 = vld [vmem:[%s3 + $0x10] sm:$0xff]
    %v32 = vld [vmem:[%s3 + $0x18] sm:$0xff]
    %v33 = vld [vmem:[%s2] sm:$0x1]
    %v35 = vlaneseq
    %v36 = vshrl.u32 %v35, 7
    %v37 = vsub.s32 0, %v36
    %v38 = vrot.slane %v33, %v37
    %vm40 = vcmask 261120
    %v42 = vsel %vm40, %v24, 0
    %44 = vmatprep.subr.mxu0 0.0
    %45 = vmatpush1.msra.mxu0 %v25
    %46 = vmatprep.subr.mxu0 0.0
    %47 = vmatpush1.msra.mxu0 %v26
    %48 = vmatprep.subr.mxu0 0.0
    %49 = vmatpush1.msra.mxu0 %v27
    %50 = vmatprep.subr.mxu0 0.0
    %51 = vmatpush1.msra.mxu0 %v28
    %52 = vmatprep.subr.mxu0 0.0
    %53 = vmatpush1.msra.mxu0 0.0
    %54 = vmatprep.subr.mxu0 0.0
    %55 = vmatpush1.msra.mxu0 0.0
    %56 = vmatprep.subr.mxu0 0.0
    %57 = vmatpush1.msra.mxu0 0.0
    %58 = vmatprep.subr.mxu0 0.0
    %59 = vmatpush1.msra.mxu0 0.0
    %60 = vmatprep.subr.mxu0 0.0
    %61 = vmatpush1.msra.mxu0 0.0
    %62 = vmatprep.subr.mxu0 0.0
    %63 = vmatpush1.msra.mxu0 0.0
    %64 = vmatprep.subr.mxu0 0.0
    %65 = vmatpush1.msra.mxu0 0.0
    %66 = vmatprep.subr.mxu0 0.0
    %67 = vmatpush1.msra.mxu0 0.0
    %68 = vmatprep.subr.mxu0 0.0
    %69 = vmatpush1.msra.mxu0 0.0
    %70 = vmatprep.subr.mxu0 0.0
    %71 = vmatpush1.msra.mxu0 0.0
    %72 = vmatprep.subr.mxu0 0.0
    %73 = vmatpush1.msra.mxu0 0.0
    %74 = vmatprep.subr.mxu0 0.0
    %75 = vmatpush1.msra.mxu0 0.0
    %76 = vmatprep.subr.mxu0 0.0
    %77 = vmatpush1.msra.mxu0 0.0
    %78 = vmatprep.subr.mxu0 0.0
    %79 = vmatpush1.msra.mxu0 0.0
    %80 = vmatprep.subr.mxu0 0.0
    %81 = vmatpush1.msra.mxu0 0.0
    %82 = vmatprep.subr.mxu0 0.0
    %83 = vmatpush1.msra.mxu0 0.0
    %84 = vmatprep.subr.mxu0 0.0
    %85 = vmatpush1.msra.mxu0 0.0
    %86 = vmatprep.subr.mxu0 0.0
    %87 = vmatpush1.msra.mxu0 0.0
    %88 = vmatprep.subr.mxu0 0.0
    %89 = vmatpush1.msra.mxu0 0.0
    %90 = vmatprep.subr.mxu0 0.0
    %91 = vmatpush1.msra.mxu0 0.0
    %92 = vmatprep.subr.mxu0 0.0
    %93 = vmatpush1.msra.mxu0 0.0
    %94 = vmatprep.subr.mxu0 0.0
    %95 = vmatpush1.msra.mxu0 0.0
    %96 = vmatprep.subr.mxu0 0.0
    %97 = vmatpush1.msra.mxu0 0.0
    %98 = vmatprep.subr.mxu0 0.0
    %99 = vmatpush1.msra.mxu0 0.0
    %100 = vmatprep.subr.mxu0 0.0
    %101 = vmatpush1.msra.mxu0 0.0
    %102 = vmatprep.subr.mxu0 0.0
    %103 = vmatpush1.msra.mxu0 0.0
    %104 = vmatprep.subr.mxu0 0.0
    %105 = vmatpush1.msra.mxu0 0.0
    %106 = vmatprep.subr.mxu0 0.0
    %107 = vmatpush1.msra.mxu0 0.0
    %108 = vmatprep.mubr.f32.mxu0 0.0
    %109 = vmatmul.mubr.f32.gmra.mrb[0].mxu0 %v42
    %v110 = vpop.f32.mrb[0].mxu0
    %v111 = vadd.f32 %v38, %v110
    %v112 = vpop.f32.mrb[0].mxu0
    %113 = vdwg.mxu0
    %v114 = vmax.f32 %v111, 0.0
    %vm115 = vcmask 64512
    %116 = vst.msk [vmem:[#allocation2] sm:$0xff] %vm115, %v114
    %v117 = vld [vmem:[%s4] sm:$0x1]
    %v119 = vlaneseq
    %v120 = vshrl.u32 %v119, 7
    %v121 = vsub.s32 0, %v120
    %v122 = vrot.slane %v117, %v121
    %124 = vmatprep.subr.mxu0 0.0
    %125 = vmatpush1.msra.mxu0 %v29
    %126 = vmatprep.subr.mxu0 0.0
    %127 = vmatpush1.msra.mxu0 %v30
    %128 = vmatprep.subr.mxu0 0.0
    %129 = vmatpush1.msra.mxu0 %v31
    %130 = vmatprep.subr.mxu0 0.0
    %131 = vmatpush1.msra.mxu0 %v32
    %132 = vmatprep.subr.mxu0 0.0
    %133 = vmatpush1.msra.mxu0 0.0
    %134 = vmatprep.subr.mxu0 0.0
    %135 = vmatpush1.msra.mxu0 0.0
    %136 = vmatprep.subr.mxu0 0.0
    %137 = vmatpush1.msra.mxu0 0.0
    %138 = vmatprep.subr.mxu0 0.0
    %139 = vmatpush1.msra.mxu0 0.0
    %140 = vmatprep.subr.mxu0 0.0
    %141 = vmatpush1.msra.mxu0 0.0
    %142 = vmatprep.subr.mxu0 0.0
    %143 = vmatpush1.msra.mxu0 0.0
    %144 = vmatprep.subr.mxu0 0.0
    %145 = vmatpush1.msra.mxu0 0.0
    %146 = vmatprep.subr.mxu0 0.0
    %147 = vmatpush1.msra.mxu0 0.0
    %148 = vmatprep.subr.mxu0 0.0
    %149 = vmatpush1.msra.mxu0 0.0
    %150 = vmatprep.subr.mxu0 0.0
    %151 = vmatpush1.msra.mxu0 0.0
    %152 = vmatprep.subr.mxu0 0.0
    %153 = vmatpush1.msra.mxu0 0.0
    %154 = vmatprep.subr.mxu0 0.0
    %155 = vmatpush1.msra.mxu0 0.0
    %156 = vmatprep.subr.mxu0 0.0
    %157 = vmatpush1.msra.mxu0 0.0
    %158 = vmatprep.subr.mxu0 0.0
    %159 = vmatpush1.msra.mxu0 0.0
    %160 = vmatprep.subr.mxu0 0.0
    %161 = vmatpush1.msra.mxu0 0.0
    %162 = vmatprep.subr.mxu0 0.0
    %163 = vmatpush1.msra.mxu0 0.0
    %164 = vmatprep.subr.mxu0 0.0
    %165 = vmatpush1.msra.mxu0 0.0
    %166 = vmatprep.subr.mxu0 0.0
    %167 = vmatpush1.msra.mxu0 0.0
    %168 = vmatprep.subr.mxu0 0.0
    %169 = vmatpush1.msra.mxu0 0.0
    %170 = vmatprep.subr.mxu0 0.0
    %171 = vmatpush1.msra.mxu0 0.0
    %172 = vmatprep.subr.mxu0 0.0
    %173 = vmatpush1.msra.mxu0 0.0
    %174 = vmatprep.subr.mxu0 0.0
    %175 = vmatpush1.msra.mxu0 0.0
    %176 = vmatprep.subr.mxu0 0.0
    %177 = vmatpush1.msra.mxu0 0.0
    %178 = vmatprep.subr.mxu0 0.0
    %179 = vmatpush1.msra.mxu0 0.0
    %180 = vmatprep.subr.mxu0 0.0
    %181 = vmatpush1.msra.mxu0 0.0
    %182 = vmatprep.subr.mxu0 0.0
    %183 = vmatpush1.msra.mxu0 0.0
    %184 = vmatprep.subr.mxu0 0.0
    %185 = vmatpush1.msra.mxu0 0.0
    %186 = vmatprep.subr.mxu0 0.0
    %187 = vmatpush1.msra.mxu0 0.0
    %188 = vmatprep.mubr.f32.mxu0 0.0
    %189 = vmatmul.mubr.f32.gmra.mrb[0].mxu0 %v42
    %v190 = vpop.f32.mrb[0].mxu0
    %v191 = vadd.f32 %v122, %v190
    %v192 = vpop.f32.mrb[0].mxu0
    %193 = vdwg.mxu0
    %v194 = vmax.f32 %v191, 0.0
    %v195 = vadd.f32 %v194, 0.01
    %196 = vst.msk [vmem:[#allocation4] sm:$0xff] %vm115, %v195
    // Predicated region
    $region22: #{tpu_custom_call.1} parent=1 // pred_check
      _
    $region23: #{tpu_custom_call.1} parent=1 // pred_check_branch
      %198 = sbr.rel (0) target = $region25
    $region24: #{tpu_custom_call.1} parent=1 // pred_region
      %s200 = ssub.s32 128, 128
      %201 = vsyncadd [#allocation3], %s200
      %s203 = sshll.u32 [#allocation2], 4
      %s204 = int_to_ptr.vmem [resolvable:$true] %s203
      %206 = dma.vmem_to_hbm [thread:$0]  %s204, 128, %s5, [#allocation3]
    $region25: #{tpu_custom_call.1} parent=1 // pred_fallthru
      _
    // Predicated region
    $region26: #{tpu_custom_call.1} parent=1 // pred_check
      _
    $region27: #{tpu_custom_call.1} parent=1 // pred_check_branch
      %208 = sbr.rel (0) target = $region29
    $region28: #{tpu_custom_call.1} parent=1 // pred_region
      %s210 = ssub.s32 128, 128
      %211 = vsyncadd [#allocation5], %s210
      %s213 = sshll.u32 [#allocation4], 4
      %s214 = int_to_ptr.vmem [resolvable:$true] %s213
      %216 = dma.vmem_to_hbm [thread:$0]  %s214, 128, %s6, [#allocation5]
    $region29: #{tpu_custom_call.1} parent=1 // pred_fallthru
      _
    // Predicated region
    $region30: #{tpu_custom_call.1} parent=1 // pred_check
      _
    $region31: #{tpu_custom_call.1} parent=1 // pred_check_branch
      %218 = sbr.rel (0) target = $region33
    $region32: #{tpu_custom_call.1} parent=1 // pred_region
      %219 = dma.done [#allocation3], 128
    $region33: #{tpu_custom_call.1} parent=1 // pred_fallthru
      _
    // Predicated region
    $region34: #{tpu_custom_call.1} parent=1 // pred_check
      _
    $region35: #{tpu_custom_call.1} parent=1 // pred_check_branch
      %221 = sbr.rel (0) target = $region37
    $region36: #{tpu_custom_call.1} parent=1 // pred_region
      %222 = dma.done [#allocation5], 128
    $region37: #{tpu_custom_call.1} parent=1 // pred_fallthru
      _
    %223 = vsyncpa [#allocation3], 1
    %224 = vsyncpa [#allocation5], 1

</llo_original>
